<compile_context>
chip_gen: v7x
topology: tpu7x:2x2x1
jax: 0.10.0
libtpu: 0.0.40
codegen_flags: <defaults>
</compile_context>

<pallas_src>
import math
import numpy as np
import jax
import jax.numpy as jnp
from jax.experimental import pallas as pl
from jax.experimental.pallas import tpu as pltpu


def _aligned_window(full, start, length, align):
    """Smallest window [base, base+blk) with blk % align == 0, base % blk == 0,
    base + blk <= full, covering [start, start+length).  Falls back to the
    full axis when no such aligned window fits (still legal: blk == full)."""
    blk = ((max(length, 1) + align - 1) // align) * align
    while blk < full:
        base = (start // blk) * blk
        if base + blk >= start + length and base + blk <= full:
            return int(blk), int(base)
        blk += align
    return int(full), 0


def _bilinear_matrix(crop_start, crop_len, out_len, win_base, win_len):
    """R [out_len, win_len] s.t. R @ x[win_base:win_base+win_len] is the
    bilinear resize (align_corners=False, antialias=False) of
    x[crop_start:crop_start+crop_len] to out_len."""
    R = np.zeros((out_len, win_len), dtype=np.float32)
    scale = crop_len / out_len
    for o in range(out_len):
        src = max((o + 0.5) * scale - 0.5, 0.0)
        lo = min(int(np.floor(src)), crop_len - 1)
        hi = min(lo + 1, crop_len - 1)
        frac = src - lo
        R[o, crop_start - win_base + lo] += 1.0 - frac
        R[o, crop_start - win_base + hi] += frac
    return R


def _vmem_capacity_bytes():
    """Per-generation VMEM capacity (v5e/v6e 128 MiB, v7x 64 MiB)."""
    try:
        info = pltpu.get_tpu_info()
        cap = getattr(info, "vmem_capacity_bytes", None)
        if cap:
            return int(cap)
    except Exception:
        pass
    return 64 * 1024 * 1024  # conservative default (v7x per-core physical)


def _make_resized_crop_kernel(P, h_blk, w_blk, size, batched):
    def kernel(ry_ref, rxT_ref, img_ref, out_ref):
        # ry_ref : (size, h_blk) f32    rxT_ref: (w_blk, size) f32 (pre-transposed)
        # img_ref: (P, h_blk, w_blk) native dtype
        # out_ref: (1, size, P*size)   lane-dense slab
        ry = ry_ref[...]
        rxT = rxT_ref[...]
        if batched:
            # One big MXU dot over the input block (W contraction, all planes).
            x2 = img_ref[...].astype(jnp.float32).reshape(P * h_blk, w_blk)
            t = jnp.dot(x2, rxT, preferred_element_type=jnp.float32)  # (P*h_blk, size)
            if P == 1:
                t2 = t
            else:
                # (P*h_blk, size) -> (h_blk, P*size): small-intermediate
                # rearrange via aligned static row-slices + one lane concat.
                t2 = jnp.concatenate(
                    [t[p * h_blk:(p + 1) * h_blk, :] for p in range(P)], axis=-1)
            out = jnp.dot(ry, t2, preferred_element_type=jnp.float32)  # (size, P*size)
        else:
            # Fallback when h_blk is not sublane-aligned (h_blk == H, H % 8 != 0).
            pieces = []
            for p in range(P):
                xp = img_ref[p].astype(jnp.float32)
                tp = jnp.dot(xp, rxT, preferred_element_type=jnp.float32)
                pieces.append(jnp.dot(ry, tp, preferred_element_type=jnp.float32))
            out = pieces[0] if P == 1 else jnp.concatenate(pieces, axis=-1)
        out_ref[0] = out.astype(out_ref.dtype)

    return kernel


class MAETransform:
    """JAX/Pallas port of the PyTorch MAETransform module."""

    def __init__(self, size=8):
        self.size = size
        # crop params (set before forward, as the torch module expects)
        self.i, self.j, self.h, self.w = (0, 0, 0, 0)
        # self.interpolation is never set in the torch __init__; torchvision's
        # resized_crop default (BILINEAR) is implemented here.

    def forward(self, img):
        B, C, H, W = img.shape
        size = self.size
        N = B * C
        i, j, h, w = self.i, self.j, self.h, self.w

        if size <= 0 or h <= 0 or w <= 0:
            raise ValueError(
                "MAETransform: crop (h, w) and output size must be > 0; set "
                "(i, j, h, w) before calling forward().")
        if i < 0 or j < 0 or i + h > H or j + w > W:
            raise ValueError("MAETransform: crop window out of bounds.")

        # ---- crop-window-limited DMA: aligned covering windows --------------
        h_blk, r_base = _aligned_window(H, i, h, 8)      # sublane-aligned rows
        w_blk, c_base = _aligned_window(W, j, w, 128)    # lane-aligned cols
        rb_idx, cb_idx = r_base // h_blk, c_base // w_blk  # block indices

        ry = jnp.asarray(_bilinear_matrix(i, h, size, r_base, h_blk))       # (size, h_blk)
        rxT = jnp.asarray(_bilinear_matrix(j, w, size, c_base, w_blk).T)    # (w_blk, size)

        # Native dtype; cast to f32 inside the kernel (no wrapper HBM rewrite).
        img_flat = img.reshape(N, H, W)
        in_item = np.dtype(img.dtype).itemsize
        out_item = in_item

        # ---- per-generation VMEM budget -> planes per grid step (P) ---------
        vmem_cap = _vmem_capacity_bytes()
        vmem_limit = min((vmem_cap * 3) // 4, 96 * 1024 * 1024)
        fixed = 2 * (size * h_blk + w_blk * size) * 4            # Ry / RxT blocks
        per_plane = (h_blk * w_blk * (2 * in_item + 4)           # img block x2 + f32 cast temp
                     + 2 * h_blk * size * 4                      # W-contracted intermediate + slab share
                     + size * size * (4 + 2 * out_item))         # out slab + out block x2
        budget = max(int(vmem_limit * 0.8) - fixed, per_plane)
        p_vmem = max(1, budget // per_plane)

        p_max = min(int(p_vmem), 64)                 # codegen / compile-time cap
        if N >= 2:
            p_max = min(p_max, max(1, N // 2))       # G >= 2: use both TCs on v7x
        lane_pref = 128 // math.gcd(size, 128)       # keep P*size a multiple of 128 if possible
        P = (p_max // lane_pref) * lane_pref if p_max >= lane_pref else p_max
        P = max(int(P), 1)
        G = -(-N // P)                               # ceil; tail block discarded in wrapper

        batched = (h_blk % 8 == 0)
        kernel = _make_resized_crop_kernel(P, h_blk, w_blk, size, batched)

        out_k = pl.pallas_call(
            kernel,
            out_shape=jax.ShapeDtypeStruct((G, size, P * size), img.dtype),
            grid_spec=pltpu.PrefetchScalarGridSpec(
                num_scalar_prefetch=0,
                grid=(G,),
                in_specs=[
                    pl.BlockSpec((size, h_blk), lambda n: (0, 0)),
                    pl.BlockSpec((w_blk, size), lambda n: (0, 0)),
                    # only the aligned crop window of each plane is DMA'd
                    pl.BlockSpec((P, h_blk, w_blk),
                                 lambda n: (n, rb_idx, cb_idx)),
                ],
                out_specs=pl.BlockSpec((1, size, P * size),
                                       lambda n: (n, 0, 0)),
            ),
            compiler_params=pltpu.CompilerParams(
                dimension_semantics=("parallel",),
                vmem_limit_bytes=int(vmem_limit)),
        )(ry, rxT, img_flat)

        # Layout plumbing back to (B, C, size, size); drop the padded tail.
        out = (out_k.reshape(G, size, P, size)
                     .transpose(0, 2, 1, 3)
                     .reshape(G * P, size, size)[:N]
                     .reshape(B, C, size, size))
        return out

    __call__ = forward


if __name__ == "__main__":
    key = jax.random.PRNGKey(0)
    B, C, H, W = 2, 4, 16, 16
    img = jax.random.uniform(key, (B, C, H, W), dtype=jnp.float32)

    tf = MAETransform(size=8)
    # set a non-degenerate crop (the torch module's (0,0,0,0) defaults are
    # placeholders meant to be overwritten before forward).
    tf.i, tf.j, tf.h, tf.w = 2, 3, 10, 12

    out = tf(img)
    out = jax.block_until_ready(out)

    # pure-JAX reference of the same crop + bilinear-resize math (full-width
    # interpolation matrices).
    ry_full = jnp.asarray(_bilinear_matrix(tf.i, tf.h, tf.size, 0, H))
    rx_full = jnp.asarray(_bilinear_matrix(tf.j, tf.w, tf.size, 0, W))
    ref = jnp.einsum("oh,bchw,pw->bcop", ry_full, img, rx_full)

    assert out.shape == (B, C, tf.size, tf.size)
    assert jnp.allclose(out, ref, atol=1e-5, rtol=1e-5)
    print("KERNEL_OK")
</pallas_src>

<mosaic_0001>
module attributes {stable_mosaic.version = 11 : i64} {
  func.func @kernel(%arg0: i32, %arg1: memref<8x16xf32, #tpu.memory_space<vmem>>, %arg2: memref<16x8xf32, #tpu.memory_space<vmem>>, %arg3: memref<4x16x16xf32, #tpu.memory_space<vmem>>, %arg4: memref<1x8x32xf32, #tpu.memory_space<vmem>>) attributes {dimension_semantics = [#tpu.dimension_semantics<parallel>], iteration_bounds = array<i64: 2>, scalar_prefetch = 0 : i64, scratch_operands = 0 : i64, tpu.core_type = #tpu.core_type<tc>, window_params = [{pipeline_mode = #tpu.pipeline_mode<synchronous>, transform_indices = @transform_0, window_bounds = array<i64: 8, 16>}, {pipeline_mode = #tpu.pipeline_mode<synchronous>, transform_indices = @transform_1, window_bounds = array<i64: 16, 8>}, {transform_indices = @transform_2, window_bounds = array<i64: 4, 16, 16>}, {transform_indices = @transform_3, window_bounds = array<i64: 1, 8, 32>}]} {
    %c0 = arith.constant 0 : index
    %c0_0 = arith.constant 0 : index
    %0 = vector.load %arg1[%c0, %c0_0] : memref<8x16xf32, #tpu.memory_space<vmem>>, vector<8x16xf32>
    %c0_1 = arith.constant 0 : index
    %c0_2 = arith.constant 0 : index
    %1 = vector.load %arg2[%c0_1, %c0_2] : memref<16x8xf32, #tpu.memory_space<vmem>>, vector<16x8xf32>
    %c0_3 = arith.constant 0 : index
    %c0_4 = arith.constant 0 : index
    %c0_5 = arith.constant 0 : index
    %2 = vector.load %arg3[%c0_3, %c0_4, %c0_5] : memref<4x16x16xf32, #tpu.memory_space<vmem>>, vector<4x16x16xf32>
    %3 = vector.shape_cast %2 : vector<4x16x16xf32> to vector<64x16xf32>
    %cst = arith.constant dense<0.000000e+00> : vector<64x8xf32>
    %4 = tpu.matmul %3, %1, %cst {dimension_numbers = #tpu.dot_dimension_numbers<[1], [0], [0], [1], [0, 0, 1, 1], [], []>} : vector<64x16xf32>, vector<16x8xf32>, vector<64x8xf32> -> vector<64x8xf32>
    %5 = vector.extract_strided_slice %4 {offsets = [0, 0], sizes = [16, 8], strides = [1, 1]} : vector<64x8xf32> to vector<16x8xf32>
    %6 = vector.extract_strided_slice %4 {offsets = [16, 0], sizes = [16, 8], strides = [1, 1]} : vector<64x8xf32> to vector<16x8xf32>
    %7 = vector.extract_strided_slice %4 {offsets = [32, 0], sizes = [16, 8], strides = [1, 1]} : vector<64x8xf32> to vector<16x8xf32>
    %8 = vector.extract_strided_slice %4 {offsets = [48, 0], sizes = [16, 8], strides = [1, 1]} : vector<64x8xf32> to vector<16x8xf32>
    %9 = tpu.concatenate %5, %6, %7, %8 in 1 : vector<16x8xf32>, vector<16x8xf32>, vector<16x8xf32>, vector<16x8xf32> -> vector<16x32xf32>
    %cst_6 = arith.constant dense<0.000000e+00> : vector<8x32xf32>
    %10 = tpu.matmul %0, %9, %cst_6 {dimension_numbers = #tpu.dot_dimension_numbers<[1], [0], [0], [1], [0, 0, 1, 1], [], []>} : vector<8x16xf32>, vector<16x32xf32>, vector<8x32xf32> -> vector<8x32xf32>
    %c0_7 = arith.constant 0 : index
    %c0_8 = arith.constant 0 : index
    %c0_9 = arith.constant 0 : index
    %11 = vector.load %arg4[%c0_7, %c0_8, %c0_9] : memref<1x8x32xf32, #tpu.memory_space<vmem>>, vector<1x8x32xf32>
    %12 = vector.shape_cast %11 : vector<1x8x32xf32> to vector<8x32xf32>
    %13 = vector.shape_cast %10 : vector<8x32xf32> to vector<1x8x32xf32>
    tpu.vector_store %arg4[%c0_7, %c0_8, %c0_9], %13 {strides = array<i32>} : memref<1x8x32xf32, #tpu.memory_space<vmem>>, vector<1x8x32xf32>,
    return
  }
  func.func @transform_0(%arg0: i32) -> (i32, i32) {
    %c0_i32 = arith.constant 0 : i32
    %c0_i32_0 = arith.constant 0 : i32
    %c0_i32_1 = arith.constant 0 : i32
    return %c0_i32, %c0_i32_0 : i32, i32
  }
  func.func @transform_1(%arg0: i32) -> (i32, i32) {
    %c0_i32 = arith.constant 0 : i32
    %c0_i32_0 = arith.constant 0 : i32
    %c0_i32_1 = arith.constant 0 : i32
    return %c0_i32, %c0_i32_0 : i32, i32
  }
  func.func @transform_2(%arg0: i32) -> (i32, i32, i32) {
    %c0_i32 = arith.constant 0 : i32
    %c0_i32_0 = arith.constant 0 : i32
    %c0_i32_1 = arith.constant 0 : i32
    return %arg0, %c0_i32, %c0_i32_0 : i32, i32, i32
  }
  func.func @transform_3(%arg0: i32) -> (i32, i32, i32) {
    %c0_i32 = arith.constant 0 : i32
    %c0_i32_0 = arith.constant 0 : i32
    %c0_i32_1 = arith.constant 0 : i32
    return %arg0, %c0_i32, %c0_i32_0 : i32, i32, i32
  }
}

</mosaic_0001>

<llo_original>
// kernel: tpu_custom_call.1
$region0: #{tpu_custom_call.1}
  #allocation0 [shape = 'u32[]', space=smem, size = 0x4, offset = 0x4, fixed_abs, tag = 'smem constant byte address 0x4 - core index']
  #allocation1 [shape = 'u32[144,128]{1,0:T(1,128)}', space=vmem, size = 0x12000, scoped, tag = 'internal scratch']
  %s0 = inlined_call_operand.vmem [shape: f32[8,16], index: 0, kind: input, shape index: {}]
  %s1 = inlined_call_operand.vmem [shape: f32[16,8], index: 1, kind: input, shape index: {}]
  %s2 = inlined_call_operand.hbm [shape: f32[8,16,16], index: 2, kind: input, shape index: {}]
  %s3 = inlined_call_operand.hbm [shape: f32[2,8,32], index: 3, kind: output, shape index: {}]
  %s4 = sld [smem:[#allocation0]]
  $region49: #{tpu_custom_call.1} parent=0
    _
  %s6 = ssub.s32 1, %s4
  %s7 = scalar_select 0, %s6, %s4
  $region1: #{tpu_custom_call.1} parent=0
    #allocation2 [shape = 'u8[65536]{0}', space=vmem, size = 0x10000, scoped, tag = 'input window, operand 2']
    #allocation3 [shape = 's32[2]{0}', space=sflag, size = 0x8, scoped, tag = 'scoped memory for tpu_custom_call.1']
    #allocation4 [shape = 's32[2]{0}', space=sflag, size = 0x8, scoped, tag = 'scoped memory for tpu_custom_call.1']
    #allocation5 [shape = 'u8[8192]{0}', space=vmem, size = 0x2000, scoped, tag = 'output window, operand 0']
    %8 = vsyncpa [#allocation3], 0
    %s9 = scalar_lea.sflag [#allocation3], 1
    %10 = vsyncpa %s9, 0
    %11 = vsyncpa [#allocation4], 0
    %s12 = scalar_lea.sflag [#allocation4], 1
    %13 = vsyncpa %s12, 0
    loop: start=0, step=1, limit=4
    $region2: #{tpu_custom_call.1} parent=1 // loop_pre_header
      _
    $region3: #{tpu_custom_call.1} parent=1 // loop_header
      %s15 = sphi 0, %s19
      %p16 = scmp.ge.s32.totalorder %s15, 4
      %s23 = sphi 0, %s23
      %s25 = sphi 0, %s23
      %s26 = sphi 0, %s25
      %s40 = sphi 0, %s26
      %s44 = sphi 0, %s44
      %s46 = sphi 0, %s44
      %s47 = sphi 0, %s46
      %s61 = sphi 0, %s47
      %s67 = sphi 0, %s69
      %s70 = sphi 0, %s67
      %s71 = sphi 0, %s70
      %s87 = sphi 0, %s71
      %s93 = sphi 0, %s95
      %s96 = sphi 0, %s93
      %s97 = sphi 0, %s96
      %s113 = sphi 0, %s97
    $region4: #{tpu_custom_call.1} parent=1 // loop_header_branch
      %18 = sbr.rel (%p16) target = $region8
    $region5: #{tpu_custom_call.1} parent=1 // loop_body
      %s20 = ssub.s32 %s15, 1
      %s21 = ssub.s32 %s15, 2
      %s22 = sadd.s32 %s15, 1
      %s24 = sadd.s32 %s23, 1
      %p27 = scmp.eq.s32.totalorder %s15, 1
      %p28 = scmp.ne.s32.totalorder %s23, %s25
      %p29 = scmp.eq.s32.totalorder %s15, 0
      %p30 = por %p28, %p29
      %p31 = scmp.ne.s32.totalorder %s23, %s25
      %p32 = scmp.eq.s32.totalorder %s20, 1
      %p33 = por %p31, %p32
      %p34 = scmp.ne.s32.totalorder %s25, %s26
      %p35 = scmp.eq.s32.totalorder %s20, 0
      %p36 = por %p34, %p35
      %p37 = scmp.ne.s32.totalorder %s25, %s26
      %p38 = scmp.eq.s32.totalorder %s21, 1
      %p39 = por %p37, %p38
      %p41 = scmp.ne.s32.totalorder %s26, %s40
      %p42 = scmp.eq.s32.totalorder %s21, 0
      %p43 = por %p41, %p42
      %s45 = sadd.s32 %s44, 1
      %p48 = scmp.eq.s32.totalorder %s15, 1
      %p49 = scmp.ne.s32.totalorder %s44, %s46
      %p50 = scmp.eq.s32.totalorder %s15, 0
      %p51 = por %p49, %p50
      %p52 = scmp.ne.s32.totalorder %s44, %s46
      %p53 = scmp.eq.s32.totalorder %s20, 1
      %p54 = por %p52, %p53
      %p55 = scmp.ne.s32.totalorder %s46, %s47
      %p56 = scmp.eq.s32.totalorder %s20, 0
      %p57 = por %p55, %p56
      %p58 = scmp.ne.s32.totalorder %s46, %s47
      %p59 = scmp.eq.s32.totalorder %s21, 1
      %p60 = por %p58, %p59
      %p62 = scmp.ne.s32.totalorder %s47, %s61
      %p63 = scmp.eq.s32.totalorder %s21, 0
      %p64 = por %p62, %p63
      %s65 = ssub.s32 %s15, %s22
      %p66 = scmp.eq.s32.totalorder %s65, 0
      %s68 = sadd.s32 %s67, 1
      %s69 = scalar_select %p66, %s67, %s68
      %p72 = pneg %p66
      %p73 = scmp.eq.s32.totalorder %s15, 1
      %p74 = por %p72, %p73
      %p75 = scmp.ne.s32.totalorder %s67, %s70
      %p76 = scmp.eq.s32.totalorder %s15, 0
      %p77 = por %p75, %p76
      %p78 = scmp.ne.s32.totalorder %s67, %s70
      %p79 = scmp.eq.s32.totalorder %s20, 1
      %p80 = por %p78, %p79
      %p81 = scmp.ne.s32.totalorder %s70, %s71
      %p82 = scmp.eq.s32.totalorder %s20, 0
      %p83 = por %p81, %p82
      %p84 = scmp.ne.s32.totalorder %s70, %s71
      %p85 = scmp.eq.s32.totalorder %s21, 1
      %p86 = por %p84, %p85
      %p88 = scmp.ne.s32.totalorder %s71, %s87
      %p89 = scmp.eq.s32.totalorder %s21, 0
      %p90 = por %p88, %p89
      %s91 = ssub.s32 %s15, %s22
      %p92 = scmp.eq.s32.totalorder %s91, 0
      %s94 = sadd.s32 %s93, 1
      %s95 = scalar_select %p92, %s93, %s94
      %p98 = pneg %p92
      %p99 = scmp.eq.s32.totalorder %s15, 1
      %p100 = por %p98, %p99
      %p101 = scmp.ne.s32.totalorder %s93, %s96
      %p102 = scmp.eq.s32.totalorder %s15, 0
      %p103 = por %p101, %p102
      %p104 = scmp.ne.s32.totalorder %s93, %s96
      %p105 = scmp.eq.s32.totalorder %s20, 1
      %p106 = por %p104, %p105
      %p107 = scmp.ne.s32.totalorder %s96, %s97
      %p108 = scmp.eq.s32.totalorder %s20, 0
      %p109 = por %p107, %p108
      %p110 = scmp.ne.s32.totalorder %s96, %s97
      %p111 = scmp.eq.s32.totalorder %s21, 1
      %p112 = por %p110, %p111
      %p114 = scmp.ne.s32.totalorder %s97, %s113
      %p115 = scmp.eq.s32.totalorder %s21, 0
      %p116 = por %p114, %p115
      %p117 = scmp.le.s32.totalorder 1, %s15
      %p118 = scmp.lt.s32.totalorder %s15, 3
      %p119 = pnand %p117, %p118
      %p120 = pneg %p119
      // Predicated region
      $region9: #{tpu_custom_call.1} parent=5 // pred_check
        _
      $region10: #{tpu_custom_call.1} parent=5 // pred_check_branch
        %122 = sbr.rel (%p119) target = $region12
      $region11: #{tpu_custom_call.1} parent=5 // pred_region
        %s123 = ssub.s32 %s15, 1
        // Predicated region
        $region13: #{tpu_custom_call.1} parent=11 // pred_check
          %p124 = pneg %p36
        $region14: #{tpu_custom_call.1} parent=11 // pred_check_branch
          %126 = sbr.rel (%p124) target = $region16
        $region15: #{tpu_custom_call.1} parent=11 // pred_region
          _
        $region16: #{tpu_custom_call.1} parent=11 // pred_fallthru
          _
        // Predicated region
        $region17: #{tpu_custom_call.1} parent=11 // pred_check
          %p127 = pneg %p57
        $region18: #{tpu_custom_call.1} parent=11 // pred_check_branch
          %129 = sbr.rel (%p127) target = $region20
        $region19: #{tpu_custom_call.1} parent=11 // pred_region
          _
        $region20: #{tpu_custom_call.1} parent=11 // pred_fallthru
          _
      $region12: #{tpu_custom_call.1} parent=5 // pred_fallthru
        _
      %p130 = scmp.lt.s32.totalorder %s15, 2
      // Predicated region
      $region21: #{tpu_custom_call.1} parent=5 // pred_check
        %p131 = pneg %p130
      $region22: #{tpu_custom_call.1} parent=5 // pred_check_branch
        %133 = sbr.rel (%p131) target = $region24
      $region23: #{tpu_custom_call.1} parent=5 // pred_region
        // Predicated region
        $region25: #{tpu_custom_call.1} parent=23 // pred_check
          %p134 = pneg %p77
        $region26: #{tpu_custom_call.1} parent=23 // pred_check_branch
          %136 = sbr.rel (%p134) target = $region28
        $region27: #{tpu_custom_call.1} parent=23 // pred_region
          %s137 = sand.u32 %s67, 1
          %s138 = scalar_lea.sflag [#allocation3], %s137
          %s139 = sand.u32 %s67, 1
          %s140 = smul.addr %s139, 64
          %s141 = scalar_lea.vmem [#allocation2], %s140
          %s142 = smul.u32 4, %s15
          %s144 = ssub.s32 1024, 1024
          %145 = vsyncadd %s138, %s144
          %s146 = smul.addr %s142, 2
          %s147 = smul.addr %s146, 128
          %s148 = scalar_lea.hbm %s2, %s147
          %s149 = sshll.u32 %s141, 4
          %s150 = int_to_ptr.vmem [resolvable:$true] %s149
          %155 = dma.hbm_to_vmem [thread:$0]  %s148, 1024, %s150, %s138, 128, 128, 8
        $region28: #{tpu_custom_call.1} parent=23 // pred_fallthru
          _
      $region24: #{tpu_custom_call.1} parent=5 // pred_fallthru
        _
      %p156 = scmp.le.s32.totalorder 1, %s15
      %p157 = scmp.lt.s32.totalorder %s15, 3
      %p158 = pnand %p156, %p157
      %p159 = pneg %p158
      // Predicated region
      $region29: #{tpu_custom_call.1} parent=5 // pred_check
        _
      $region30: #{tpu_custom_call.1} parent=5 // pred_check_branch
        %161 = sbr.rel (%p158) target = $region32
      $region31: #{tpu_custom_call.1} parent=5 // pred_region
        %s162 = ssub.s32 %s15, 1
        %s163 = sand.u32 %s70, 1
        %s164 = scalar_lea.sflag [#allocation3], %s163
        %s165 = sand.u32 %s70, 1
        %s166 = smul.addr %s165, 64
        %s167 = scalar_lea.vmem [#allocation2], %s166
        // Predicated region
        $region33: #{tpu_custom_call.1} parent=31 // pred_check
          %p168 = pneg %p83
        $region34: #{tpu_custom_call.1} parent=31 // pred_check_branch
          %170 = sbr.rel (%p168) target = $region36
        $region35: #{tpu_custom_call.1} parent=31 // pred_region
          %171 = dma.done %s164, 1024
        $region36: #{tpu_custom_call.1} parent=31 // pred_fallthru
          _
        %p172 = pneg %p36
        %p173 = pneg %p33
        %p174 = pneg %p57
        %p175 = pneg %p54
        %s176 = sand.u32 %s70, 1
        %s177 = scalar_lea.sflag [#allocation3], %s176
        %s178 = sand.u32 %s70, 1
        %s179 = smul.addr %s178, 64
        %s180 = scalar_lea.vmem [#allocation2], %s179
        %p181 = pneg %p83
        %p182 = pneg %p80
        %p183 = pneg %p109
        %p184 = pneg %p106
        %s185 = sand.u32 %s96, 1
        %s186 = scalar_lea.sflag [#allocation4], %s185
        %s187 = sand.u32 %s96, 1
        %s188 = smul.addr %s187, 8
        %s189 = scalar_lea.vmem [#allocation5], %s188
        %s190 = smul.u32 4, %s20
        %v191 = vld [vmem:[%s0] sm:$0xff]
        %v192 = vld [vmem:[%s1] sm:$0xff]
        %v193 = vld [vmem:[%s1 + $0x8] sm:$0xff]
        %v194 = vld [vmem:[%s167] sm:$0xff]
        %v195 = vld [vmem:[%s167 + $0x8] sm:$0xff]
        %v196 = vld [vmem:[%s167 + $0x10] sm:$0xff]
        %v197 = vld [vmem:[%s167 + $0x18] sm:$0xff]
        %v198 = vld [vmem:[%s167 + $0x20] sm:$0xff]
        %v199 = vld [vmem:[%s167 + $0x28] sm:$0xff]
        %v200 = vld [vmem:[%s167 + $0x30] sm:$0xff]
        %v201 = vld [vmem:[%s167 + $0x38] sm:$0xff]
        %vm202 = vcmask 130048
        %v204 = vsel %vm202, %v194, 0
        %v207 = vsel %vm202, %v195, 0
        %v210 = vsel %vm202, %v196, 0
        %v213 = vsel %vm202, %v197, 0
        %v216 = vsel %vm202, %v198, 0
        %v219 = vsel %vm202, %v199, 0
        %v222 = vsel %vm202, %v200, 0
        %v225 = vsel %vm202, %v201, 0
        %227 = vmatprep.subr.mxu0 0.0
        %228 = vmatpush1.msra.mxu0 %v192
        %229 = vmatprep.subr.mxu0 0.0
        %230 = vmatpush1.msra.mxu0 %v193
        %231 = vmatprep.subr.mxu0 0.0
        %232 = vmatpush1.msra.mxu0 0.0
        %233 = vmatprep.subr.mxu0 0.0
        %234 = vmatpush1.msra.mxu0 0.0
        %235 = vmatprep.subr.mxu0 0.0
        %236 = vmatpush1.msra.mxu0 0.0
        %237 = vmatprep.subr.mxu0 0.0
        %238 = vmatpush1.msra.mxu0 0.0
        %239 = vmatprep.subr.mxu0 0.0
        %240 = vmatpush1.msra.mxu0 0.0
        %241 = vmatprep.subr.mxu0 0.0
        %242 = vmatpush1.msra.mxu0 0.0
        %243 = vmatprep.subr.mxu0 0.0
        %244 = vmatpush1.msra.mxu0 0.0
        %245 = vmatprep.subr.mxu0 0.0
        %246 = vmatpush1.msra.mxu0 0.0
        %247 = vmatprep.subr.mxu0 0.0
        %248 = vmatpush1.msra.mxu0 0.0
        %249 = vmatprep.subr.mxu0 0.0
        %250 = vmatpush1.msra.mxu0 0.0
        %251 = vmatprep.subr.mxu0 0.0
        %252 = vmatpush1.msra.mxu0 0.0
        %253 = vmatprep.subr.mxu0 0.0
        %254 = vmatpush1.msra.mxu0 0.0
        %255 = vmatprep.subr.mxu0 0.0
        %256 = vmatpush1.msra.mxu0 0.0
        %257 = vmatprep.subr.mxu0 0.0
        %258 = vmatpush1.msra.mxu0 0.0
        %259 = vmatprep.subr.mxu0 0.0
        %260 = vmatpush1.msra.mxu0 0.0
        %261 = vmatprep.subr.mxu0 0.0
        %262 = vmatpush1.msra.mxu0 0.0
        %263 = vmatprep.subr.mxu0 0.0
        %264 = vmatpush1.msra.mxu0 0.0
        %265 = vmatprep.subr.mxu0 0.0
        %266 = vmatpush1.msra.mxu0 0.0
        %267 = vmatprep.subr.mxu0 0.0
        %268 = vmatpush1.msra.mxu0 0.0
        %269 = vmatprep.subr.mxu0 0.0
        %270 = vmatpush1.msra.mxu0 0.0
        %271 = vmatprep.subr.mxu0 0.0
        %272 = vmatpush1.msra.mxu0 0.0
        %273 = vmatprep.subr.mxu0 0.0
        %274 = vmatpush1.msra.mxu0 0.0
        %275 = vmatprep.subr.mxu0 0.0
        %276 = vmatpush1.msra.mxu0 0.0
        %277 = vmatprep.subr.mxu0 0.0
        %278 = vmatpush1.msra.mxu0 0.0
        %279 = vmatprep.subr.mxu0 0.0
        %280 = vmatpush1.msra.mxu0 0.0
        %281 = vmatprep.subr.mxu0 0.0
        %282 = vmatpush1.msra.mxu0 0.0
        %283 = vmatprep.subr.mxu0 0.0
        %284 = vmatpush1.msra.mxu0 0.0
        %285 = vmatprep.subr.mxu0 0.0
        %286 = vmatpush1.msra.mxu0 0.0
        %287 = vmatprep.subr.mxu0 0.0
        %288 = vmatpush1.msra.mxu0 0.0
        %289 = vmatprep.subr.mxu0 0.0
        %290 = vmatpush1.msra.mxu0 0.0
        %291 = vmatprep.mubr.f32.mxu0 0.0
        %292 = vmatmul.mubr.f32.gmra.mrb[0].mxu0 %v204
        %v293 = vpop.f32.mrb[0].mxu0
        %v294 = vadd.f32 0.0, %v293
        %v295 = vpop.f32.mrb[0].mxu0
        %296 = vmatprep.mubr.f32.mxu0 0.0
        %297 = vmatmul.mubr.f32.gmra.mrb[0].mxu0 %v207
        %v298 = vpop.f32.mrb[0].mxu0
        %v299 = vadd.f32 0.0, %v298
        %v300 = vpop.f32.mrb[0].mxu0
        %301 = vmatprep.mubr.f32.mxu0 0.0
        %302 = vmatmul.mubr.f32.gmra.mrb[0].mxu0 %v210
        %v303 = vpop.f32.mrb[0].mxu0
        %v304 = vadd.f32 0.0, %v303
        %v305 = vpop.f32.mrb[0].mxu0
        %306 = vmatprep.mubr.f32.mxu0 0.0
        %307 = vmatmul.mubr.f32.gmra.mrb[0].mxu0 %v213
        %v308 = vpop.f32.mrb[0].mxu0
        %v309 = vadd.f32 0.0, %v308
        %v310 = vpop.f32.mrb[0].mxu0
        %311 = vmatprep.mubr.f32.mxu0 0.0
        %312 = vmatmul.mubr.f32.gmra.mrb[0].mxu0 %v216
        %v313 = vpop.f32.mrb[0].mxu0
        %v314 = vadd.f32 0.0, %v313
        %v315 = vpop.f32.mrb[0].mxu0
        %316 = vmatprep.mubr.f32.mxu0 0.0
        %317 = vmatmul.mubr.f32.gmra.mrb[0].mxu0 %v219
        %v318 = vpop.f32.mrb[0].mxu0
        %v319 = vadd.f32 0.0, %v318
        %v320 = vpop.f32.mrb[0].mxu0
        %321 = vmatprep.mubr.f32.mxu0 0.0
        %322 = vmatmul.mubr.f32.gmra.mrb[0].mxu0 %v222
        %v323 = vpop.f32.mrb[0].mxu0
        %v324 = vadd.f32 0.0, %v323
        %v325 = vpop.f32.mrb[0].mxu0
        %326 = vmatprep.mubr.f32.mxu0 0.0
        %327 = vmatmul.mubr.f32.gmra.mrb[0].mxu0 %v225
        %v328 = vpop.f32.mrb[0].mxu0
        %v329 = vadd.f32 0.0, %v328
        %v330 = vpop.f32.mrb[0].mxu0
        %331 = vdwg.mxu0
        %334 = vrot.lane.b32.xlu0 %v304, 8
        %v335 = vpop.permute.xlu0 %334
        %336 = vrot.lane.b32.xlu0 %v309, 8
        %v337 = vpop.permute.xlu0 %336
        %342 = vrot.lane.b32.xlu0 %v314, 16
        %v343 = vpop.permute.xlu0 %342
        %344 = vrot.lane.b32.xlu0 %v319, 16
        %v345 = vpop.permute.xlu0 %344
        %350 = vrot.lane.b32.xlu0 %v324, 24
        %v351 = vpop.permute.xlu0 %350
        %352 = vrot.lane.b32.xlu0 %v329, 24
        %v353 = vpop.permute.xlu0 %352
        %vm356 = vcmask 64512
        %v357 = vsel %vm356, %v294, %v335
        %v358 = vsel %vm356, %v299, %v337
        %v359 = vsel %vm202, %v357, %v343
        %v360 = vsel %vm202, %v358, %v345
        %vm361 = vcmask 195584
        %v362 = vsel %vm361, %v359, %v351
        %v363 = vsel %vm361, %v360, %v353
        %v365 = vsel %vm202, %v191, 0
        %367 = vmatprep.subr.mxu0 0.0
        %368 = vmatpush1.msra.mxu0 %v362
        %369 = vmatprep.subr.mxu0 0.0
        %370 = vmatpush1.msra.mxu0 %v363
        %371 = vmatprep.subr.mxu0 0.0
        %372 = vmatpush1.msra.mxu0 0.0
        %373 = vmatprep.subr.mxu0 0.0
        %374 = vmatpush1.msra.mxu0 0.0
        %375 = vmatprep.subr.mxu0 0.0
        %376 = vmatpush1.msra.mxu0 0.0
        %377 = vmatprep.subr.mxu0 0.0
        %378 = vmatpush1.msra.mxu0 0.0
        %379 = vmatprep.subr.mxu0 0.0
        %380 = vmatpush1.msra.mxu0 0.0
        %381 = vmatprep.subr.mxu0 0.0
        %382 = vmatpush1.msra.mxu0 0.0
        %383 = vmatprep.subr.mxu0 0.0
        %384 = vmatpush1.msra.mxu0 0.0
        %385 = vmatprep.subr.mxu0 0.0
        %386 = vmatpush1.msra.mxu0 0.0
        %387 = vmatprep.subr.mxu0 0.0
        %388 = vmatpush1.msra.mxu0 0.0
        %389 = vmatprep.subr.mxu0 0.0
        %390 = vmatpush1.msra.mxu0 0.0
        %391 = vmatprep.subr.mxu0 0.0
        %392 = vmatpush1.msra.mxu0 0.0
        %393 = vmatprep.subr.mxu0 0.0
        %394 = vmatpush1.msra.mxu0 0.0
        %395 = vmatprep.subr.mxu0 0.0
        %396 = vmatpush1.msra.mxu0 0.0
        %397 = vmatprep.subr.mxu0 0.0
        %398 = vmatpush1.msra.mxu0 0.0
        %399 = vmatprep.subr.mxu0 0.0
        %400 = vmatpush1.msra.mxu0 0.0
        %401 = vmatprep.subr.mxu0 0.0
        %402 = vmatpush1.msra.mxu0 0.0
        %403 = vmatprep.subr.mxu0 0.0
        %404 = vmatpush1.msra.mxu0 0.0
        %405 = vmatprep.subr.mxu0 0.0
        %406 = vmatpush1.msra.mxu0 0.0
        %407 = vmatprep.subr.mxu0 0.0
        %408 = vmatpush1.msra.mxu0 0.0
        %409 = vmatprep.subr.mxu0 0.0
        %410 = vmatpush1.msra.mxu0 0.0
        %411 = vmatprep.subr.mxu0 0.0
        %412 = vmatpush1.msra.mxu0 0.0
        %413 = vmatprep.subr.mxu0 0.0
        %414 = vmatpush1.msra.mxu0 0.0
        %415 = vmatprep.subr.mxu0 0.0
        %416 = vmatpush1.msra.mxu0 0.0
        %417 = vmatprep.subr.mxu0 0.0
        %418 = vmatpush1.msra.mxu0 0.0
        %419 = vmatprep.subr.mxu0 0.0
        %420 = vmatpush1.msra.mxu0 0.0
        %421 = vmatprep.subr.mxu0 0.0
        %422 = vmatpush1.msra.mxu0 0.0
        %423 = vmatprep.subr.mxu0 0.0
        %424 = vmatpush1.msra.mxu0 0.0
        %425 = vmatprep.subr.mxu0 0.0
        %426 = vmatpush1.msra.mxu0 0.0
        %427 = vmatprep.subr.mxu0 0.0
        %428 = vmatpush1.msra.mxu0 0.0
        %429 = vmatprep.subr.mxu0 0.0
        %430 = vmatpush1.msra.mxu0 0.0
        %431 = vmatprep.mubr.f32.mxu0 0.0
        %432 = vmatmul.mubr.f32.gmra.mrb[0].mxu0 %v365
        %v433 = vpop.f32.mrb[0].mxu0
        %v434 = vadd.f32 0.0, %v433
        %v435 = vpop.f32.mrb[0].mxu0
        %436 = vdwg.mxu0
        %vm437 = vcmask 261120
        %438 = vst.msk [vmem:[%s189] sm:$0xff] %vm437, %v434
        %s439 = sand.u32 %s96, 1
        %s440 = scalar_lea.sflag [#allocation4], %s439
        %s441 = sand.u32 %s96, 1
        %s442 = smul.addr %s441, 8
        %s443 = scalar_lea.vmem [#allocation5], %s442
        // Predicated region
        $region37: #{tpu_custom_call.1} parent=31 // pred_check
          %p444 = pneg %p106
        $region38: #{tpu_custom_call.1} parent=31 // pred_check_branch
          %446 = sbr.rel (%p444) target = $region40
        $region39: #{tpu_custom_call.1} parent=31 // pred_region
          %s448 = ssub.s32 128, 128
          %449 = vsyncadd %s440, %s448
          %s450 = smul.addr %s20, 128
          %s451 = scalar_lea.hbm %s3, %s450
          %s453 = sshll.u32 %s443, 4
          %s454 = int_to_ptr.vmem [resolvable:$true] %s453
          %456 = dma.vmem_to_hbm [thread:$0]  %s454, 128, %s451, %s440
        $region40: #{tpu_custom_call.1} parent=31 // pred_fallthru
          _
      $region32: #{tpu_custom_call.1} parent=5 // pred_fallthru
        _
      %p457 = scmp.le.s32.totalorder 2, %s15
      // Predicated region
      $region41: #{tpu_custom_call.1} parent=5 // pred_check
        %p458 = pneg %p457
      $region42: #{tpu_custom_call.1} parent=5 // pred_check_branch
        %460 = sbr.rel (%p458) target = $region44
      $region43: #{tpu_custom_call.1} parent=5 // pred_region
        %s461 = ssub.s32 %s15, 2
        // Predicated region
        $region45: #{tpu_custom_call.1} parent=43 // pred_check
          %p462 = pneg %p112
        $region46: #{tpu_custom_call.1} parent=43 // pred_check_branch
          %464 = sbr.rel (%p462) target = $region48
        $region47: #{tpu_custom_call.1} parent=43 // pred_region
          %s465 = sand.u32 %s97, 1
          %s466 = scalar_lea.sflag [#allocation4], %s465
          %s467 = sand.u32 %s97, 1
          %s468 = smul.addr %s467, 8
          %s469 = scalar_lea.vmem [#allocation5], %s468
          %470 = dma.done %s466, 128
        $region48: #{tpu_custom_call.1} parent=43 // pred_fallthru
          _
      $region44: #{tpu_custom_call.1} parent=5 // pred_fallthru
        _
    $region6: #{tpu_custom_call.1} parent=1 // loop_footer
      %s19 = sadd.s32 1, %s15
    $region7: #{tpu_custom_call.1} parent=1 // loop_footer_branch
      %14 = sbr.rel target = $region3
    $region8: #{tpu_custom_call.1} parent=1 // loop_exit
      _
    %471 = vsyncpa [#allocation3], 1
    %s472 = scalar_lea.sflag [#allocation3], 1
    %473 = vsyncpa %s472, 1
    %474 = vsyncpa [#allocation4], 1
    %s475 = scalar_lea.sflag [#allocation4], 1
    %476 = vsyncpa %s475, 1

</llo_original>
